<compile_context>
chip_gen: v5e
topology: v5e:2x2
jax: 0.10.0
libtpu: 0.0.40
codegen_flags: <defaults>
</compile_context>

<pallas_src>
import numpy as np
import jax
import jax.numpy as jnp
from jax.experimental import pallas as pl
from jax.experimental.pallas import tpu as pltpu

_reduction_modes = ["none", "mean", "sum"]

_LANES = 128
_MAX_BLOCK_ROWS = 4096          # (4096, 128) f32 tile = 2 MiB per buffer


def _round_up(x, m):
    return (x + m - 1) // m * m


# ------------------------------- kernels ------------------------------------
def _sq_err_partial_kernel(p_ref, t_ref, loss_ref):
    """Partial sum of (p - t)^2, reduced to one sublane-tiled (8,128) block."""
    d = p_ref[...].astype(jnp.float32) - t_ref[...].astype(jnp.float32)
    e = d * d
    # (bm,128) -> (bm//8, 8, 128) is layout-preserving; axis-0 sum is plain
    # vreg adds on the VPU (no cross-lane XLU reduce, no masked store).
    loss_ref[...] = jnp.sum(e.reshape(-1, 8, _LANES), axis=0)


def _sq_err_partial_weighted_kernel(p_ref, t_ref, w_ref, loss_ref, wsum_ref):
    """Partial sums of w*(p - t)^2 and of w (for 'mean' normalization)."""
    w = w_ref[...].astype(jnp.float32)
    d = p_ref[...].astype(jnp.float32) - t_ref[...].astype(jnp.float32)
    loss_ref[...] = jnp.sum((w * (d * d)).reshape(-1, 8, _LANES), axis=0)
    wsum_ref[...] = jnp.sum(w.reshape(-1, 8, _LANES), axis=0)


def _sq_err_elementwise_kernel(p_ref, t_ref, o_ref):
    d = p_ref[...].astype(jnp.float32) - t_ref[...].astype(jnp.float32)
    o_ref[...] = (d * d).astype(o_ref.dtype)


def _sq_err_elementwise_weighted_kernel(p_ref, t_ref, w_ref, o_ref):
    d = p_ref[...].astype(jnp.float32) - t_ref[...].astype(jnp.float32)
    o_ref[...] = (w_ref[...].astype(jnp.float32) * (d * d)).astype(o_ref.dtype)


# ------------------------------- wrapper ------------------------------------
def _flatten_pad(x, rows_pad):
    flat = x.reshape(-1)
    pad = rows_pad * _LANES - flat.shape[0]
    if pad:
        flat = jnp.pad(flat, (0, pad))          # zero pad -> no loss contribution
    return flat.reshape(rows_pad, _LANES)


def mse_loss(pred, target, weight=None, reduction="mean", loss_weight=1.0):
    if reduction not in _reduction_modes:
        raise ValueError(f"Unsupported reduction mode: {reduction}. "
                         f"Supported ones are: {_reduction_modes}")
    assert pred.shape == target.shape, (pred.shape, target.shape)

    shape = pred.shape
    n_elems = int(np.prod(shape))
    has_weight = weight is not None

    # Lane-dense 2-D view: (rows, 128).
    rows = -(-n_elems // _LANES)
    if rows <= _MAX_BLOCK_ROWS:
        bm = max(8, _round_up(rows, 8))         # whole problem in one grid step
        rows_pad = bm
    else:
        bm = _MAX_BLOCK_ROWS
        rows_pad = _round_up(rows, bm)
    grid = (rows_pad // bm,)

    inputs = [_flatten_pad(pred, rows_pad), _flatten_pad(target, rows_pad)]
    if has_weight:
        # neosr/basicsr allows weight channel dim of 1 or C; broadcast once.
        inputs.append(_flatten_pad(jnp.broadcast_to(weight, shape), rows_pad))

    in_block = pl.BlockSpec((bm, _LANES), lambda i: (i, 0))
    in_specs = [in_block] * len(inputs)

    # Real double-buffered footprint + headroom; never rely on the default
    # scoped VMEM limit (16 MiB on v5e).
    vmem_limit = (len(inputs) + 1) * 2 * bm * _LANES * 4 + (8 << 20)
    compiler_params = pltpu.CompilerParams(
        dimension_semantics=("parallel",),
        vmem_limit_bytes=int(vmem_limit),
    )

    if reduction == "none":
        kernel = (_sq_err_elementwise_weighted_kernel if has_weight
                  else _sq_err_elementwise_kernel)
        out = pl.pallas_call(
            kernel,
            grid=grid,
            in_specs=in_specs,
            out_specs=pl.BlockSpec((bm, _LANES), lambda i: (i, 0)),
            out_shape=jax.ShapeDtypeStruct((rows_pad, _LANES), pred.dtype),
            compiler_params=compiler_params,
        )(*inputs)
        out = out.reshape(-1)[:n_elems].reshape(shape)
        return loss_weight * out

    # 'mean' / 'sum': per-program (8,128) partial-sum blocks -> grid stays
    # fully parallel; final tiny reduction in plain JAX.
    partial_spec = pl.BlockSpec((8, _LANES), lambda i: (i, 0))
    partial_shape = jax.ShapeDtypeStruct((grid[0] * 8, _LANES), jnp.float32)

    if has_weight:
        loss_part, w_part = pl.pallas_call(
            _sq_err_partial_weighted_kernel,
            grid=grid,
            in_specs=in_specs,
            out_specs=[partial_spec, partial_spec],
            out_shape=(partial_shape, partial_shape),
            compiler_params=compiler_params,
        )(*inputs)
        total = jnp.sum(loss_part)
        if reduction == "sum":
            return loss_weight * total
        # 'mean' with weight (basicsr/neosr weight_reduce_loss): divide by the
        # sum of the broadcast weight.
        return loss_weight * total / jnp.sum(w_part)

    loss_part = pl.pallas_call(
        _sq_err_partial_kernel,
        grid=grid,
        in_specs=in_specs,
        out_specs=partial_spec,
        out_shape=partial_shape,
        compiler_params=compiler_params,
    )(*inputs)
    total = jnp.sum(loss_part)
    if reduction == "sum":
        return loss_weight * total
    return loss_weight * total / n_elems


class MSELoss:
    """MSE (L2) loss — Pallas TPU forward pass (matches the PyTorch module)."""

    def __init__(self, loss_weight=1.0, reduction="mean"):
        if reduction not in _reduction_modes:
            raise ValueError(f"Unsupported reduction mode: {reduction}. "
                             f"Supported ones are: {_reduction_modes}")
        self.loss_weight = loss_weight
        self.reduction = reduction

    def __call__(self, pred, target, weight=None, **kwargs):
        return mse_loss(pred, target, weight=weight,
                        reduction=self.reduction, loss_weight=self.loss_weight)


# --------------------------------- test --------------------------------------
if __name__ == "__main__":
    key = jax.random.PRNGKey(0)
    k1, k2, k3 = jax.random.split(key, 3)

    # 1) Small NCHW case through the module API ('mean').
    N, C, H, W = 2, 4, 16, 16
    pred = jax.random.normal(k1, (N, C, H, W), jnp.float32)
    target = jax.random.normal(k2, (N, C, H, W), jnp.float32)
    loss = jax.block_until_ready(MSELoss(loss_weight=1.0, reduction="mean")(pred, target))
    ref = jnp.mean((pred - target) ** 2)
    np.testing.assert_allclose(np.asarray(loss), np.asarray(ref), rtol=1e-4, atol=1e-6)

    # 2) Odd shape (exercises lane padding).
    p_odd = jax.random.normal(k1, (2, 3, 10, 13), jnp.float32)
    t_odd = jax.random.normal(k2, (2, 3, 10, 13), jnp.float32)
    loss_odd = jax.block_until_ready(mse_loss(p_odd, t_odd, reduction="mean"))
    ref_odd = jnp.mean((p_odd - t_odd) ** 2)
    np.testing.assert_allclose(np.asarray(loss_odd), np.asarray(ref_odd), rtol=1e-4, atol=1e-6)

    # 3) Larger case (grid > 1, row padding) with loss_weight.
    p_big = jax.random.normal(k1, (2, 4, 256, 384), jnp.float32)
    t_big = jax.random.normal(k2, (2, 4, 256, 384), jnp.float32)
    loss_big = jax.block_until_ready(mse_loss(p_big, t_big, reduction="mean", loss_weight=0.5))
    ref_big = 0.5 * jnp.mean((p_big - t_big) ** 2)
    np.testing.assert_allclose(np.asarray(loss_big), np.asarray(ref_big), rtol=1e-4, atol=1e-6)

    # 4) 'sum' reduction.
    loss_sum = jax.block_until_ready(mse_loss(pred, target, reduction="sum"))
    ref_sum = jnp.sum((pred - target) ** 2)
    np.testing.assert_allclose(np.asarray(loss_sum), np.asarray(ref_sum), rtol=1e-4, atol=1e-5)

    # 5) Element-wise weight with 'mean'.
    w = jax.random.uniform(k3, (N, C, H, W), jnp.float32)
    loss_w = jax.block_until_ready(mse_loss(pred, target, weight=w, reduction="mean"))
    ref_w = jnp.sum(w * (pred - target) ** 2) / jnp.sum(w)
    np.testing.assert_allclose(np.asarray(loss_w), np.asarray(ref_w), rtol=1e-4, atol=1e-6)

    # 6) 'none' reduction (element-wise map back to NCHW).
    loss_none = jax.block_until_ready(mse_loss(pred, target, reduction="none"))
    ref_none = (pred - target) ** 2
    np.testing.assert_allclose(np.asarray(loss_none), np.asarray(ref_none), rtol=1e-5, atol=1e-6)

    print("KERNEL_OK")
</pallas_src>

<mosaic_0001>
module attributes {stable_mosaic.version = 11 : i64} {
  func.func @_sq_err_partial_kernel(%arg0: i32, %arg1: memref<16x128xf32, #tpu.memory_space<vmem>>, %arg2: memref<16x128xf32, #tpu.memory_space<vmem>>, %arg3: memref<8x128xf32, #tpu.memory_space<vmem>>) attributes {dimension_semantics = [#tpu.dimension_semantics<parallel>], iteration_bounds = array<i64: 1>, scalar_prefetch = 0 : i64, scratch_operands = 0 : i64, tpu.core_type = #tpu.core_type<tc>, window_params = [{transform_indices = @transform_0, window_bounds = array<i64: 16, 128>}, {transform_indices = @transform_1, window_bounds = array<i64: 16, 128>}, {transform_indices = @transform_2, window_bounds = array<i64: 8, 128>}]} {
    %c0 = arith.constant 0 : index
    %c0_0 = arith.constant 0 : index
    %0 = vector.load %arg1[%c0, %c0_0] : memref<16x128xf32, #tpu.memory_space<vmem>>, vector<16x128xf32>
    %c0_1 = arith.constant 0 : index
    %c0_2 = arith.constant 0 : index
    %1 = vector.load %arg2[%c0_1, %c0_2] : memref<16x128xf32, #tpu.memory_space<vmem>>, vector<16x128xf32>
    %2 = arith.subf %0, %1 : vector<16x128xf32>
    %3 = arith.mulf %2, %2 : vector<16x128xf32>
    %4 = vector.shape_cast %3 : vector<16x128xf32> to vector<2x8x128xf32>
    %cst = arith.constant dense<0.000000e+00> : vector<8x128xf32>
    %5 = vector.multi_reduction <add>, %4, %cst [0] : vector<2x8x128xf32> to vector<8x128xf32>
    %c0_3 = arith.constant 0 : index
    %c0_4 = arith.constant 0 : index
    %6 = vector.load %arg3[%c0_3, %c0_4] : memref<8x128xf32, #tpu.memory_space<vmem>>, vector<8x128xf32>
    tpu.vector_store %arg3[%c0_3, %c0_4], %5 {strides = array<i32>} : memref<8x128xf32, #tpu.memory_space<vmem>>, vector<8x128xf32>,
    return
  }
  func.func @transform_0(%arg0: i32) -> (i32, i32) {
    %c0_i32 = arith.constant 0 : i32
    %c0_i32_0 = arith.constant 0 : i32
    return %arg0, %c0_i32 : i32, i32
  }
  func.func @transform_1(%arg0: i32) -> (i32, i32) {
    %c0_i32 = arith.constant 0 : i32
    %c0_i32_0 = arith.constant 0 : i32
    return %arg0, %c0_i32 : i32, i32
  }
  func.func @transform_2(%arg0: i32) -> (i32, i32) {
    %c0_i32 = arith.constant 0 : i32
    %c0_i32_0 = arith.constant 0 : i32
    return %arg0, %c0_i32 : i32, i32
  }
}

</mosaic_0001>

<llo_original>
// kernel: tpu_custom_call.1
$region0: #{tpu_custom_call.1}
  #allocation0 [shape = 'u32[]', space=smem, size = 0x4, offset = 0x4, fixed_abs, tag = 'smem constant byte address 0x4 - core index']
  #allocation1 [shape = 'u32[72,128]{1,0:T(1,128)}', space=vmem, size = 0x9000, scoped, tag = 'internal scratch']
  %s0 = inlined_call_operand.hbm [shape: f32[16,128], index: 0, kind: input, shape index: {}]
  %s1 = inlined_call_operand.hbm [shape: f32[16,128], index: 1, kind: input, shape index: {}]
  %s2 = inlined_call_operand.hbm [shape: f32[8,128], index: 2, kind: output, shape index: {}]
  %s3 = sld [smem:[#allocation0]]
  $region26: #{tpu_custom_call.1} parent=0
    _
  %s5 = ssub.s32 1, %s3
  %s6 = scalar_select 0, %s5, %s3
  $region1: #{tpu_custom_call.1} parent=0
    #allocation2 [shape = 'u8[8192]{0}', space=vmem, size = 0x2000, scoped, tag = 'input window, operand 0, single buffered']
    #allocation3 [shape = 's32[1]{0}', space=sflag, size = 0x4, scoped, tag = 'scoped memory for tpu_custom_call.1']
    #allocation4 [shape = 's32[1]{0}', space=sflag, size = 0x4, scoped, tag = 'scoped memory for tpu_custom_call.1']
    #allocation5 [shape = 'u8[8192]{0}', space=vmem, size = 0x2000, scoped, tag = 'input window, operand 1, single buffered']
    #allocation6 [shape = 's32[1]{0}', space=sflag, size = 0x4, scoped, tag = 'scoped memory for tpu_custom_call.1']
    #allocation7 [shape = 'u8[4096]{0}', space=vmem, size = 0x1000, scoped, tag = 'output window, operand 0, single buffered']
    %7 = vsyncpa [#allocation3], 0
    %8 = vsyncpa [#allocation6], 0
    %9 = vsyncpa [#allocation4], 0
    // Predicated region
    $region2: #{tpu_custom_call.1} parent=1 // pred_check
      _
    $region3: #{tpu_custom_call.1} parent=1 // pred_check_branch
      %11 = sbr.rel (0) target = $region5
    $region4: #{tpu_custom_call.1} parent=1 // pred_region
      %13 = vsyncadd [#allocation3], 0
      %s14 = sshll.u32 %s0, 4
      %s15 = int_to_ptr.hbm [resolvable:$true] %s14
      %s16 = sshll.u32 [#allocation2], 4
      %s17 = int_to_ptr.vmem [resolvable:$true] %s16
      %22 = dma.hbm_to_vmem [thread:$0]  %s15, 256, %s17, [#allocation3], 128, 128, 8
    $region5: #{tpu_custom_call.1} parent=1 // pred_fallthru
      _
    // Predicated region
    $region6: #{tpu_custom_call.1} parent=1 // pred_check
      _
    $region7: #{tpu_custom_call.1} parent=1 // pred_check_branch
      %24 = sbr.rel (0) target = $region9
    $region8: #{tpu_custom_call.1} parent=1 // pred_region
      %26 = vsyncadd [#allocation6], 0
      %s27 = sshll.u32 %s1, 4
      %s28 = int_to_ptr.hbm [resolvable:$true] %s27
      %s29 = sshll.u32 [#allocation5], 4
      %s30 = int_to_ptr.vmem [resolvable:$true] %s29
      %35 = dma.hbm_to_vmem [thread:$0]  %s28, 256, %s30, [#allocation6], 128, 128, 8
    $region9: #{tpu_custom_call.1} parent=1 // pred_fallthru
      _
    // Predicated region
    $region10: #{tpu_custom_call.1} parent=1 // pred_check
      _
    $region11: #{tpu_custom_call.1} parent=1 // pred_check_branch
      %37 = sbr.rel (0) target = $region13
    $region12: #{tpu_custom_call.1} parent=1 // pred_region
      %39 = dma.done [#allocation3], 256
    $region13: #{tpu_custom_call.1} parent=1 // pred_fallthru
      _
    // Predicated region
    $region14: #{tpu_custom_call.1} parent=1 // pred_check
      _
    $region15: #{tpu_custom_call.1} parent=1 // pred_check_branch
      %41 = sbr.rel (0) target = $region17
    $region16: #{tpu_custom_call.1} parent=1 // pred_region
      %43 = dma.done [#allocation6], 256
    $region17: #{tpu_custom_call.1} parent=1 // pred_fallthru
      _
    %v44 = vld [vmem:[#allocation2] sm:$0xff]
    %v45 = vld [vmem:[#allocation2 + $0x8] sm:$0xff]
    %v46 = vld [vmem:[#allocation5] sm:$0xff]
    %v47 = vld [vmem:[#allocation5 + $0x8] sm:$0xff]
    %v48 = vsub.f32 %v44, %v46
    %v49 = vsub.f32 %v45, %v47
    %v50 = vmul.f32 %v48, %v48
    %v51 = vmul.f32 %v49, %v49
    %v52 = vadd.f32 %v50, %v51
    %53 = vst [vmem:[#allocation7] sm:$0xff] %v52
    // Predicated region
    $region18: #{tpu_custom_call.1} parent=1 // pred_check
      _
    $region19: #{tpu_custom_call.1} parent=1 // pred_check_branch
      %55 = sbr.rel (0) target = $region21
    $region20: #{tpu_custom_call.1} parent=1 // pred_region
      %57 = vsyncadd [#allocation4], 0
      %s59 = sshll.u32 [#allocation7], 4
      %s60 = int_to_ptr.vmem [resolvable:$true] %s59
      %s61 = sshll.u32 %s2, 4
      %s62 = int_to_ptr.hbm [resolvable:$true] %s61
      %64 = dma.vmem_to_hbm [thread:$0]  %s60, 128, %s62, [#allocation4]
    $region21: #{tpu_custom_call.1} parent=1 // pred_fallthru
      _
    // Predicated region
    $region22: #{tpu_custom_call.1} parent=1 // pred_check
      _
    $region23: #{tpu_custom_call.1} parent=1 // pred_check_branch
      %66 = sbr.rel (0) target = $region25
    $region24: #{tpu_custom_call.1} parent=1 // pred_region
      %68 = dma.done [#allocation4], 128
    $region25: #{tpu_custom_call.1} parent=1 // pred_fallthru
      _
    %69 = vsyncpa [#allocation3], 1
    %70 = vsyncpa [#allocation6], 1
    %71 = vsyncpa [#allocation4], 1

</llo_original>
